<compile_context>
chip_gen: v6e
topology: v6e:2x2x1
jax: 0.10.0
libtpu: 0.0.40
codegen_flags: <defaults>
</compile_context>

<pallas_src>
import numpy as np
import jax
import jax.numpy as jnp
from jax.experimental import pallas as pl
from jax.experimental.pallas import tpu as pltpu


def _round_up(v, m):
    return ((v + m - 1) // m) * m


def _rbf_kernel(x_ref, neg2muT_ref, mu2_ref, sigma_ref, out_ref):
    # x_ref:       (TB, D)  input rows (f32, or bf16 for the v6e/v7x MXU path)
    # neg2muT_ref: (D,  Cp) precomputed (-2 * centers)^T, resident across grid
    # mu2_ref:     (1,  Cp) precomputed ||centers||^2 (f32), resident
    # sigma_ref:   (1,  Cp) per-center sigma (f32), resident
    # out_ref:     (TB, Cp) Phi (f32), lane-dense (Cp % 128 == 0)
    x = x_ref[...]
    xf = x.astype(jnp.float32)
    x2 = jnp.sum(xf * xf, axis=1, keepdims=True)                    # (TB, 1)   VPU+XLU
    # cross = -2 * x . mu^T on the MXU, f32 accumulation.
    cross = jnp.dot(x, neg2muT_ref[...],
                    preferred_element_type=jnp.float32)             # (TB, Cp)  MXU
    d2 = x2 + mu2_ref[...] + cross                                  # (TB, Cp)  VPU
    d = jnp.sqrt(jnp.maximum(d2, 0.0))                              # EUP
    out_ref[...] = jnp.exp(-sigma_ref[...] * d)                     # EUP + VPU


def rbf_layer_forward(x, centers, sigma, *, batch_tile=256,
                      compute_dtype=jnp.float32,
                      vmem_limit_bytes=64 * 1024 * 1024):
    """x: (B, D), centers: (C, D), sigma: (1, C). Returns Phi: (B, C) f32."""
    B, D = x.shape
    C, Dc = centers.shape
    assert D == Dc
    assert sigma.shape == (1, C)

    # Lane-dense output: pad center axis to a multiple of 128.
    Cp = _round_up(max(C, 128), 128)

    # Batch tile: largest multiple of 8 <= batch_tile that fits the VMEM budget;
    # batch is padded to a tile multiple (handles ragged batches).
    eff_tile = _round_up(min(batch_tile, _round_up(B, 8)), 8)

    def _footprint(t):  # double-buffered x/out + resident precomputes, f32 upper bound
        return 2 * (t * D * 4 + t * Cp * 4) + (D * Cp * 4 + 2 * Cp * 4)

    while eff_tile > 8 and _footprint(eff_tile) > vmem_limit_bytes // 2:
        eff_tile //= 2
    eff_tile = max(8, _round_up(eff_tile, 8))
    Bp = _round_up(B, eff_tile)

    # One-time wrapper precomputes, amortized over the whole grid:
    #   ||mu||^2 per center, and the -2 factor folded into transposed centers.
    centers_p = jnp.zeros((Cp, D), jnp.float32).at[:C].set(centers.astype(jnp.float32))
    mu2 = jnp.sum(centers_p * centers_p, axis=1)[None, :]            # (1, Cp)
    neg2muT = (-2.0 * centers_p).T.astype(compute_dtype)             # (D, Cp)
    sigma_p = jnp.zeros((1, Cp), jnp.float32).at[:, :C].set(sigma.astype(jnp.float32))

    x_p = jnp.zeros((Bp, D), compute_dtype).at[:B].set(x.astype(compute_dtype))

    grid = (Bp // eff_tile,)
    out = pl.pallas_call(
        _rbf_kernel,
        out_shape=jax.ShapeDtypeStruct((Bp, Cp), jnp.float32),
        grid_spec=pltpu.PrefetchScalarGridSpec(
            num_scalar_prefetch=0,
            grid=grid,
            in_specs=[
                pl.BlockSpec((eff_tile, D), lambda i: (i, 0)),   # x tile
                pl.BlockSpec((D, Cp), lambda i: (0, 0)),         # -2*centers^T (resident)
                pl.BlockSpec((1, Cp), lambda i: (0, 0)),         # ||centers||^2 (resident)
                pl.BlockSpec((1, Cp), lambda i: (0, 0)),         # sigma (resident)
            ],
            out_specs=pl.BlockSpec((eff_tile, Cp), lambda i: (i, 0)),
        ),
        compiler_params=pltpu.CompilerParams(
            dimension_semantics=("parallel",),
            vmem_limit_bytes=vmem_limit_bytes,
        ),
    )(x_p, neg2muT, mu2, sigma_p)

    # Drop padded rows/columns (padded columns hold exp(-0 * ||x||) = benign values).
    return out[:B, :C]


def make_rbf_params(centers_np, use_avg_dist):
    """Replicates RBFLayer.__init__ sigma computation (plain glue, not a kernel)."""
    c = centers_np.astype(np.float32)
    n = c.shape[0]
    dists = [np.linalg.norm(c1 - c2) for c1 in c for c2 in c]
    d_max = max(dists)
    d_avg = sum(dists) / len(dists)
    if use_avg_dist:
        sigma_val = 2.0 * d_avg
    else:
        sigma_val = d_max / np.sqrt(n)
    sigma = np.full((1, n), sigma_val, dtype=np.float32)
    return jnp.asarray(c), jnp.asarray(sigma)


if __name__ == "__main__":
    # Small deterministic shapes consistent with the module's forward:
    # inFeatures = D = 128, number of centers C = 16, batch B = 8.
    B, D, C = 8, 128, 16

    key = jax.random.PRNGKey(0)
    k_x, k_c = jax.random.split(key)

    x = jax.random.normal(k_x, (B, D), dtype=jnp.float32)
    centers_np = np.asarray(jax.random.normal(k_c, (C, D), dtype=jnp.float32))

    centers, sigma = make_rbf_params(centers_np, use_avg_dist=False)

    phi = rbf_layer_forward(x, centers, sigma)
    phi = jax.block_until_ready(phi)

    # Pure-JAX reference (mirrors the PyTorch broadcast/pow/sum/sqrt path).
    diff = x[:, None, :] - centers[None, :, :]          # (B, C, D)
    dist = jnp.sqrt(jnp.sum(diff * diff, axis=2))       # (B, C)
    phi_ref = jnp.exp(-sigma * dist)                    # (B, C)

    assert phi.shape == (B, C)
    np.testing.assert_allclose(np.asarray(phi), np.asarray(phi_ref),
                               rtol=1e-4, atol=1e-5)
    print("KERNEL_OK")
</pallas_src>

<mosaic_0001>
module attributes {stable_mosaic.version = 11 : i64} {
  func.func @_rbf_kernel(%arg0: i32, %arg1: memref<8x128xf32, #tpu.memory_space<vmem>>, %arg2: memref<128x128xf32, #tpu.memory_space<vmem>>, %arg3: memref<1x128xf32, #tpu.memory_space<vmem>>, %arg4: memref<1x128xf32, #tpu.memory_space<vmem>>, %arg5: memref<8x128xf32, #tpu.memory_space<vmem>>) attributes {dimension_semantics = [#tpu.dimension_semantics<parallel>], iteration_bounds = array<i64: 1>, scalar_prefetch = 0 : i64, scratch_operands = 0 : i64, tpu.core_type = #tpu.core_type<tc>, window_params = [{transform_indices = @transform_0, window_bounds = array<i64: 8, 128>}, {pipeline_mode = #tpu.pipeline_mode<synchronous>, transform_indices = @transform_1, window_bounds = array<i64: 128, 128>}, {pipeline_mode = #tpu.pipeline_mode<synchronous>, transform_indices = @transform_2, window_bounds = array<i64: 1, 128>}, {pipeline_mode = #tpu.pipeline_mode<synchronous>, transform_indices = @transform_3, window_bounds = array<i64: 1, 128>}, {transform_indices = @transform_4, window_bounds = array<i64: 8, 128>}]} {
    %c0 = arith.constant 0 : index
    %c0_0 = arith.constant 0 : index
    %0 = vector.load %arg1[%c0, %c0_0] : memref<8x128xf32, #tpu.memory_space<vmem>>, vector<8x128xf32>
    %1 = arith.mulf %0, %0 : vector<8x128xf32>
    %cst = arith.constant dense<0.000000e+00> : vector<8xf32>
    %2 = vector.multi_reduction <add>, %1, %cst [1] : vector<8x128xf32> to vector<8xf32>
    %3 = vector.shape_cast %2 : vector<8xf32> to vector<8x1xf32>
    %c0_1 = arith.constant 0 : index
    %c0_2 = arith.constant 0 : index
    %4 = vector.load %arg2[%c0_1, %c0_2] : memref<128x128xf32, #tpu.memory_space<vmem>>, vector<128x128xf32>
    %cst_3 = arith.constant dense<0.000000e+00> : vector<8x128xf32>
    %5 = tpu.matmul %0, %4, %cst_3 {dimension_numbers = #tpu.dot_dimension_numbers<[1], [0], [0], [1], [0, 0, 1, 1], [], []>} : vector<8x128xf32>, vector<128x128xf32>, vector<8x128xf32> -> vector<8x128xf32>
    %c0_4 = arith.constant 0 : index
    %c0_5 = arith.constant 0 : index
    %6 = vector.load %arg3[%c0_4, %c0_5] : memref<1x128xf32, #tpu.memory_space<vmem>>, vector<1x128xf32>
    %7 = vector.broadcast %3 : vector<8x1xf32> to vector<8x128xf32>
    %8 = vector.broadcast %6 : vector<1x128xf32> to vector<8x128xf32>
    %9 = arith.addf %7, %8 : vector<8x128xf32>
    %10 = arith.addf %9, %5 : vector<8x128xf32>
    %cst_6 = arith.constant 0.000000e+00 : f32
    %11 = vector.broadcast %cst_6 : f32 to vector<8x128xf32>
    %12 = arith.maximumf %10, %11 : vector<8x128xf32>
    %13 = math.sqrt %12 : vector<8x128xf32>
    %c0_7 = arith.constant 0 : index
    %c0_8 = arith.constant 0 : index
    %14 = vector.load %arg4[%c0_7, %c0_8] : memref<1x128xf32, #tpu.memory_space<vmem>>, vector<1x128xf32>
    %cst_9 = arith.constant 0.000000e+00 : f32
    %15 = vector.broadcast %cst_9 : f32 to vector<1x128xf32>
    %16 = arith.subf %15, %14 : vector<1x128xf32>
    %17 = vector.broadcast %16 : vector<1x128xf32> to vector<8x128xf32>
    %18 = arith.mulf %17, %13 : vector<8x128xf32>
    %19 = math.exp %18 : vector<8x128xf32>
    %c0_10 = arith.constant 0 : index
    %c0_11 = arith.constant 0 : index
    %20 = vector.load %arg5[%c0_10, %c0_11] : memref<8x128xf32, #tpu.memory_space<vmem>>, vector<8x128xf32>
    tpu.vector_store %arg5[%c0_10, %c0_11], %19 {strides = array<i32>} : memref<8x128xf32, #tpu.memory_space<vmem>>, vector<8x128xf32>,
    return
  }
  func.func @transform_0(%arg0: i32) -> (i32, i32) {
    %c0_i32 = arith.constant 0 : i32
    %c0_i32_0 = arith.constant 0 : i32
    return %arg0, %c0_i32 : i32, i32
  }
  func.func @transform_1(%arg0: i32) -> (i32, i32) {
    %c0_i32 = arith.constant 0 : i32
    %c0_i32_0 = arith.constant 0 : i32
    %c0_i32_1 = arith.constant 0 : i32
    return %c0_i32, %c0_i32_0 : i32, i32
  }
  func.func @transform_2(%arg0: i32) -> (i32, i32) {
    %c0_i32 = arith.constant 0 : i32
    %c0_i32_0 = arith.constant 0 : i32
    %c0_i32_1 = arith.constant 0 : i32
    return %c0_i32, %c0_i32_0 : i32, i32
  }
  func.func @transform_3(%arg0: i32) -> (i32, i32) {
    %c0_i32 = arith.constant 0 : i32
    %c0_i32_0 = arith.constant 0 : i32
    %c0_i32_1 = arith.constant 0 : i32
    return %c0_i32, %c0_i32_0 : i32, i32
  }
  func.func @transform_4(%arg0: i32) -> (i32, i32) {
    %c0_i32 = arith.constant 0 : i32
    %c0_i32_0 = arith.constant 0 : i32
    return %arg0, %c0_i32 : i32, i32
  }
}

</mosaic_0001>

<llo_original>
// kernel: tpu_custom_call.1
$region0: #{tpu_custom_call.1}
  #allocation0 [shape = 'u32[]', space=smem, size = 0x4, offset = 0x4, fixed_abs, tag = 'smem constant byte address 0x4 - core index']
  #allocation1 [shape = 'u32[144,128]{1,0:T(1,128)}', space=vmem, size = 0x12000, scoped, tag = 'internal scratch']
  %s0 = inlined_call_operand.hbm [shape: f32[8,128], index: 0, kind: input, shape index: {}]
  %s1 = inlined_call_operand.hbm [shape: f32[128,128], index: 1, kind: input, shape index: {}]
  %s2 = inlined_call_operand.vmem [shape: f32[1,128], index: 2, kind: input, shape index: {}]
  %s3 = inlined_call_operand.vmem [shape: f32[1,128], index: 3, kind: input, shape index: {}]
  %s4 = inlined_call_operand.hbm [shape: f32[8,128], index: 4, kind: output, shape index: {}]
  %s5 = sld [smem:[#allocation0]]
  $region34: #{tpu_custom_call.1} parent=0
    _
  %s7 = ssub.s32 1, %s5
  %s8 = scalar_select 0, %s7, %s5
  $region1: #{tpu_custom_call.1} parent=0
    #allocation2 [shape = 'u8[4096]{0}', space=vmem, size = 0x1000, scoped, tag = 'input window, operand 0, single buffered']
    #allocation3 [shape = 's32[1]{0}', space=sflag, size = 0x4, scoped, tag = 'scoped memory for tpu_custom_call.1']
    #allocation4 [shape = 's32[1]{0}', space=sflag, size = 0x4, scoped, tag = 'scoped memory for tpu_custom_call.1']
    #allocation5 [shape = 'u8[65536]{0}', space=vmem, size = 0x10000, scoped, tag = 'input window, operand 1, single buffered']
    #allocation6 [shape = 's32[1]{0}', space=sflag, size = 0x4, scoped, tag = 'scoped memory for tpu_custom_call.1']
    #allocation7 [shape = 'u8[4096]{0}', space=vmem, size = 0x1000, scoped, tag = 'output window, operand 0, single buffered']
    %9 = vsyncpa [#allocation3], 0
    %10 = vsyncpa [#allocation6], 0
    %11 = vsyncpa [#allocation4], 0
    // Predicated region
    $region2: #{tpu_custom_call.1} parent=1 // pred_check
      _
    $region3: #{tpu_custom_call.1} parent=1 // pred_check_branch
      %13 = sbr.rel (0) target = $region5
    $region4: #{tpu_custom_call.1} parent=1 // pred_region
      %s15 = ssub.s32 128, 128
      %16 = vsyncadd [#allocation3], %s15
      %s18 = sshll.u32 [#allocation2], 4
      %s19 = int_to_ptr.vmem [resolvable:$true] %s18
      %21 = dma.hbm_to_vmem [thread:$0]  %s0, 128, %s19, [#allocation3]
    $region5: #{tpu_custom_call.1} parent=1 // pred_fallthru
      _
    // Predicated region
    $region6: #{tpu_custom_call.1} parent=1 // pred_check
      _
    $region7: #{tpu_custom_call.1} parent=1 // pred_check_branch
      %23 = sbr.rel (0) target = $region9
    $region8: #{tpu_custom_call.1} parent=1 // pred_region
      %s25 = ssub.s32 2048, 2048
      %26 = vsyncadd [#allocation6], %s25
      %s27 = sshll.u32 [#allocation5], 4
      %s28 = int_to_ptr.vmem [resolvable:$true] %s27
      %33 = dma.hbm_to_vmem [thread:$0]  %s1, 2048, %s28, [#allocation6], 128, 128, 8
    $region9: #{tpu_custom_call.1} parent=1 // pred_fallthru
      _
    // Predicated region
    $region10: #{tpu_custom_call.1} parent=1 // pred_check
      _
    $region11: #{tpu_custom_call.1} parent=1 // pred_check_branch
      %35 = sbr.rel (0) target = $region13
    $region12: #{tpu_custom_call.1} parent=1 // pred_region
      _
    $region13: #{tpu_custom_call.1} parent=1 // pred_fallthru
      _
    // Predicated region
    $region14: #{tpu_custom_call.1} parent=1 // pred_check
      _
    $region15: #{tpu_custom_call.1} parent=1 // pred_check_branch
      %37 = sbr.rel (0) target = $region17
    $region16: #{tpu_custom_call.1} parent=1 // pred_region
      _
    $region17: #{tpu_custom_call.1} parent=1 // pred_fallthru
      _
    // Predicated region
    $region18: #{tpu_custom_call.1} parent=1 // pred_check
      _
    $region19: #{tpu_custom_call.1} parent=1 // pred_check_branch
      %39 = sbr.rel (0) target = $region21
    $region20: #{tpu_custom_call.1} parent=1 // pred_region
      %40 = dma.done [#allocation3], 128
    $region21: #{tpu_custom_call.1} parent=1 // pred_fallthru
      _
    // Predicated region
    $region22: #{tpu_custom_call.1} parent=1 // pred_check
      _
    $region23: #{tpu_custom_call.1} parent=1 // pred_check_branch
      %42 = sbr.rel (0) target = $region25
    $region24: #{tpu_custom_call.1} parent=1 // pred_region
      %43 = dma.done [#allocation6], 2048
    $region25: #{tpu_custom_call.1} parent=1 // pred_fallthru
      _
    %v44 = vld [vmem:[#allocation2] sm:$0xff]
    %v45 = vmul.f32 %v44, %v44
    %46 = vadd.xlane.f32.xlu0 %v45
    %v47 = vpop.xlane.xlu0 %46
    %v48 = vld [vmem:[#allocation5] sm:$0xff]
    %v49 = vld [vmem:[#allocation5 + $0x8] sm:$0xff]
    %v50 = vld [vmem:[#allocation5 + $0x10] sm:$0xff]
    %v51 = vld [vmem:[#allocation5 + $0x18] sm:$0xff]
    %v52 = vld [vmem:[#allocation5 + $0x20] sm:$0xff]
    %v53 = vld [vmem:[#allocation5 + $0x28] sm:$0xff]
    %v54 = vld [vmem:[#allocation5 + $0x30] sm:$0xff]
    %v55 = vld [vmem:[#allocation5 + $0x38] sm:$0xff]
    %v56 = vld [vmem:[#allocation5 + $0x40] sm:$0xff]
    %v57 = vld [vmem:[#allocation5 + $0x48] sm:$0xff]
    %v58 = vld [vmem:[#allocation5 + $0x50] sm:$0xff]
    %v59 = vld [vmem:[#allocation5 + $0x58] sm:$0xff]
    %v60 = vld [vmem:[#allocation5 + $0x60] sm:$0xff]
    %v61 = vld [vmem:[#allocation5 + $0x68] sm:$0xff]
    %v62 = vld [vmem:[#allocation5 + $0x70] sm:$0xff]
    %v63 = vld [vmem:[#allocation5 + $0x78] sm:$0xff]
    %64 = vmatprep.subr.mxu0 0.0
    %65 = vmatpush1.msra.mxu0 %v63
    %66 = vmatprep.subr.mxu0 0.0
    %67 = vmatpush1.msra.mxu0 %v62
    %68 = vmatprep.subr.mxu0 0.0
    %69 = vmatpush1.msra.mxu0 %v61
    %70 = vmatprep.subr.mxu0 0.0
    %71 = vmatpush1.msra.mxu0 %v60
    %72 = vmatprep.subr.mxu0 0.0
    %73 = vmatpush1.msra.mxu0 %v59
    %74 = vmatprep.subr.mxu0 0.0
    %75 = vmatpush1.msra.mxu0 %v58
    %76 = vmatprep.subr.mxu0 0.0
    %77 = vmatpush1.msra.mxu0 %v57
    %78 = vmatprep.subr.mxu0 0.0
    %79 = vmatpush1.msra.mxu0 %v56
    %80 = vmatprep.subr.mxu0 0.0
    %81 = vmatpush1.msra.mxu0 %v55
    %82 = vmatprep.subr.mxu0 0.0
    %83 = vmatpush1.msra.mxu0 %v54
    %84 = vmatprep.subr.mxu0 0.0
    %85 = vmatpush1.msra.mxu0 %v53
    %86 = vmatprep.subr.mxu0 0.0
    %87 = vmatpush1.msra.mxu0 %v52
    %88 = vmatprep.subr.mxu0 0.0
    %89 = vmatpush1.msra.mxu0 %v51
    %90 = vmatprep.subr.mxu0 0.0
    %91 = vmatpush1.msra.mxu0 %v50
    %92 = vmatprep.subr.mxu0 0.0
    %93 = vmatpush1.msra.mxu0 %v49
    %94 = vmatprep.subr.mxu0 0.0
    %95 = vmatpush1.msra.mxu0 %v48
    %96 = vmatprep.subr.mxu0 0.0
    %97 = vmatpush2.msra.mxu0 0.0
    %98 = vmatprep.subr.mxu0 0.0
    %99 = vmatpush2.msra.mxu0 0.0
    %100 = vmatprep.subr.mxu0 0.0
    %101 = vmatpush2.msra.mxu0 0.0
    %102 = vmatprep.subr.mxu0 0.0
    %103 = vmatpush2.msra.mxu0 0.0
    %104 = vmatprep.subr.mxu0 0.0
    %105 = vmatpush2.msra.mxu0 0.0
    %106 = vmatprep.subr.mxu0 0.0
    %107 = vmatpush2.msra.mxu0 0.0
    %108 = vmatprep.subr.mxu0 0.0
    %109 = vmatpush2.msra.mxu0 0.0
    %110 = vmatprep.subr.mxu0 0.0
    %111 = vmatpush2.msra.mxu0 0.0
    %112 = vmatprep.subr.mxu0 0.0
    %113 = vmatpush2.msra.mxu0 0.0
    %114 = vmatprep.subr.mxu0 0.0
    %115 = vmatpush2.msra.mxu0 0.0
    %116 = vmatprep.subr.mxu0 0.0
    %117 = vmatpush2.msra.mxu0 0.0
    %118 = vmatprep.subr.mxu0 0.0
    %119 = vmatpush2.msra.mxu0 0.0
    %120 = vmatprep.subr.mxu0 0.0
    %121 = vmatpush2.msra.mxu0 0.0
    %122 = vmatprep.subr.mxu0 0.0
    %123 = vmatpush2.msra.mxu0 0.0
    %124 = vmatprep.subr.mxu0 0.0
    %125 = vmatpush2.msra.mxu0 0.0
    %126 = vmatprep.subr.mxu0 0.0
    %127 = vmatpush2.msra.mxu0 0.0
    %128 = vmatprep.mubr.f32.mxu0 0.0
    %129 = vmatmul.mubr.f32.gmra.mxu0 %v44
    %v130 = vpop.f32.mrf.mxu0
    %v131 = vadd.f32 0.0, %v130
    %v132 = vpop.f32.mrf.mxu0
    %133 = vdwg.mxu0
    %v134 = vld [vmem:[%s2] sm:$0x1]
    %v136 = vlaneseq
    %v137 = vshrl.u32 %v136, 7
    %v138 = vsub.s32 0, %v137
    %v139 = vrot.slane %v134, %v138
    %v141 = vadd.f32 %v47, %v139
    %v142 = vadd.f32 %v141, %v131
    %v143 = vmax.f32 %v142, 0.0
    %v144 = vrsqrt.pop %v143
    %v145 = vmul.f32 %v143, %v144
    %vm146 = vcmp.eq.f32.partialorder %v143, inf
    %v147 = vsel %vm146, %v143, %v145
    %vm148 = vcmp.eq.f32.partialorder %v143, 0.0
    %v149 = vand.u32 %v143, 2147483648
    %v150 = vsel %vm148, %v149, %v147
    %v151 = vld [vmem:[%s3] sm:$0x1]
    %v152 = vsub.f32 0.0, %v151
    %v154 = vlaneseq
    %v155 = vshrl.u32 %v154, 7
    %v156 = vsub.s32 0, %v155
    %v157 = vrot.slane %v152, %v156
    %v159 = vmul.f32 %v157, %v150
    %v160 = vmul.f32 %v159, 1.442695
    %v161 = vpow.pop %v160
    %162 = vst [vmem:[#allocation7] sm:$0xff] %v161
    // Predicated region
    $region26: #{tpu_custom_call.1} parent=1 // pred_check
      _
    $region27: #{tpu_custom_call.1} parent=1 // pred_check_branch
      %164 = sbr.rel (0) target = $region29
    $region28: #{tpu_custom_call.1} parent=1 // pred_region
      %s166 = ssub.s32 128, 128
      %167 = vsyncadd [#allocation4], %s166
      %s169 = sshll.u32 [#allocation7], 4
      %s170 = int_to_ptr.vmem [resolvable:$true] %s169
      %172 = dma.vmem_to_hbm [thread:$0]  %s170, 128, %s4, [#allocation4]
    $region29: #{tpu_custom_call.1} parent=1 // pred_fallthru
      _
    // Predicated region
    $region30: #{tpu_custom_call.1} parent=1 // pred_check
      _
    $region31: #{tpu_custom_call.1} parent=1 // pred_check_branch
      %174 = sbr.rel (0) target = $region33
    $region32: #{tpu_custom_call.1} parent=1 // pred_region
      %175 = dma.done [#allocation4], 128
    $region33: #{tpu_custom_call.1} parent=1 // pred_fallthru
      _
    %176 = vsyncpa [#allocation3], 1
    %177 = vsyncpa [#allocation6], 1
    %178 = vsyncpa [#allocation4], 1

</llo_original>
